<compile_context>
chip_gen: v6e
topology: v6e:2x2x1
jax: 0.10.0
libtpu: 0.0.40
codegen_flags: <defaults>
</compile_context>

<pallas_src>
import jax
import jax.numpy as jnp
from jax.experimental import pallas as pl
from jax.experimental.pallas import tpu as pltpu


def _gather_rows(rows_ref, hid_ref, dst_ref, sem, tb):
    """DMA `tb` [MASK] rows (HBM -> VMEM dst) for the current batch tile.

    All SMEM row indices are read and all copies issued before any wait
    (waits break SMEM sst->sld forwarding); a single shared DMA semaphore
    collects all completions.
    """
    t = pl.program_id(0)
    copies = []
    for i in range(tb):  # static unrolled; tb DMAs in flight
        row = rows_ref[t * tb + i]
        cp = pltpu.make_async_copy(
            hid_ref.at[pl.ds(row, 1), :],   # (1, H) row in HBM
            dst_ref.at[pl.ds(i, 1), :],     # (1, H) row in VMEM
            sem)
        cp.start()
        copies.append(cp)
    for cp in copies:
        cp.wait()


def _make_kernel(tb, with_z):
    """Build the kernel for batch tiles of `tb` rows.

    Kernel args (PrefetchScalarGridSpec order):
      rows_ref:   SMEM scalar-prefetch [B_pad] int32 flat row index (b*S + mask_pos)
      hid_ref:    HBM (pl.ANY) ref, (B*S, H) flattened hidden states
      wt_ref:     VMEM (H, R_pad) classifier weight^T (bf16), lane-padded
      b_ref:      VMEM (1, R_pad) classifier bias (f32), lane-padded
      z_ref:      VMEM out (tb, H) latent representations     [only if with_z]
      logits_ref: VMEM out (tb, R_pad) relation logits
      gbuf:       VMEM scratch (tb, H) gather buffer          [only if not with_z]
      sem:        single shared DMA semaphore
    """
    if with_z:
        def kernel(rows_ref, hid_ref, wt_ref, b_ref, z_ref, logits_ref, sem):
            # Gather straight into the z output block: no scratch, no extra copy.
            _gather_rows(rows_ref, hid_ref, z_ref, sem, tb)
            z = z_ref[...]                                   # (tb, H)
            logits_ref[...] = (
                jnp.dot(z.astype(wt_ref.dtype), wt_ref[...],
                        preferred_element_type=jnp.float32)
                + b_ref[...])
        return kernel

    def kernel(rows_ref, hid_ref, wt_ref, b_ref, logits_ref, gbuf, sem):
        _gather_rows(rows_ref, hid_ref, gbuf, sem, tb)
        z = gbuf[...]
        logits_ref[...] = (
            jnp.dot(z.astype(wt_ref.dtype), wt_ref[...],
                    preferred_element_type=jnp.float32)
            + b_ref[...])
    return kernel


def relation_extractor_forward(hidden_states, mask_positions, clf_weight,
                               clf_bias, *, batch_tile=128,
                               matmul_dtype=jnp.bfloat16, return_latent=True):
    """
    Args:
      hidden_states:  [B, S, H] (stand-in for BERT last_hidden_state)
      mask_positions: [B] int32   ([MASK] token position per batch element)
      clf_weight:     [R, H]      (nn.Linear weight layout)
      clf_bias:       [R]
      batch_tile:     rows of z per grid step (rounded to a multiple of 8)
      matmul_dtype:   dtype of the dot operands (f32 accumulation regardless)
      return_latent:  also return latent_representations [B, H]
    Returns:
      dict with 'latent_representations' ([B, H] or None) and 'relation_logits' [B, R]
    """
    B, S, H = hidden_states.shape
    R = clf_weight.shape[0]
    dtype = hidden_states.dtype

    # Batch tile: multiple of 8 sublanes, capped by the padded batch. When the
    # batch allows it, keep >=2 grid steps so v7x's two TensorCores both work.
    b8 = ((B + 7) // 8) * 8
    TB = max(8, min((batch_tile // 8) * 8, b8))
    if b8 // TB < 2 and b8 >= 16:
        TB = max(8, ((b8 // 2) // 8) * 8)
    B_pad = ((B + TB - 1) // TB) * TB

    R_pad = max(128, ((R + 127) // 128) * 128)     # lane-dense classifier output

    # Clamped flat row indices (b*S + mask_pos) precomputed in the wrapper so
    # the in-kernel DMA never sees an out-of-range start. Padded batch rows
    # gather row 0 and are sliced away below. (The PyTorch reference would
    # raise on a missing [MASK]; here invalid positions are silently clamped.)
    mp = jnp.clip(mask_positions.astype(jnp.int32), 0, S - 1)
    rows = jnp.arange(B, dtype=jnp.int32) * S + mp                 # [B]
    rows_pad = jnp.zeros((B_pad,), jnp.int32).at[:B].set(rows)     # [B_pad]

    hid_flat = hidden_states.reshape(B * S, H)     # contiguous, stays in HBM

    wt_pad = jnp.zeros((H, R_pad), matmul_dtype).at[:, :R].set(
        clf_weight.T.astype(matmul_dtype))                         # (H, R_pad)
    bias_pad = jnp.zeros((1, R_pad), jnp.float32).at[:, :R].set(
        clf_bias.reshape(1, R).astype(jnp.float32))                # (1, R_pad)

    in_specs = [
        pl.BlockSpec(memory_space=pl.ANY),                    # hid_flat: raw HBM
        pl.BlockSpec((H, R_pad), lambda t, rows: (0, 0)),     # W^T: resident VMEM
        pl.BlockSpec((1, R_pad), lambda t, rows: (0, 0)),     # bias: resident VMEM
    ]
    logits_spec = pl.BlockSpec((TB, R_pad), lambda t, rows: (t, 0))
    logits_shape = jax.ShapeDtypeStruct((B_pad, R_pad), jnp.float32)

    if return_latent:
        out_specs = [pl.BlockSpec((TB, H), lambda t, rows: (t, 0)), logits_spec]
        out_shape = (jax.ShapeDtypeStruct((B_pad, H), dtype), logits_shape)
        scratch_shapes = [pltpu.SemaphoreType.DMA(())]
    else:
        out_specs = [logits_spec]
        out_shape = (logits_shape,)
        scratch_shapes = [pltpu.VMEM((TB, H), dtype), pltpu.SemaphoreType.DMA(())]

    grid_spec = pltpu.PrefetchScalarGridSpec(
        num_scalar_prefetch=1,
        grid=(B_pad // TB,),
        in_specs=in_specs,
        out_specs=out_specs,
        scratch_shapes=scratch_shapes,
    )

    outs = pl.pallas_call(
        _make_kernel(TB, return_latent),
        grid_spec=grid_spec,
        out_shape=out_shape,
        compiler_params=pltpu.CompilerParams(
            dimension_semantics=("parallel",)),
    )(rows_pad, hid_flat, wt_pad, bias_pad)

    if return_latent:
        z_out, logits_out = outs
        return {
            "latent_representations": z_out[:B],
            "relation_logits": logits_out[:B, :R],
        }
    logits_out = outs[0]
    return {
        "latent_representations": None,
        "relation_logits": logits_out[:B, :R],
    }


if __name__ == "__main__":
    key = jax.random.PRNGKey(0)
    k_hid, k_w, k_b, k_pos = jax.random.split(key, 4)

    B, S, H, R = 2, 16, 32, 8   # batch, seq, hidden_size, num_relations

    hidden_states = jax.random.normal(k_hid, (B, S, H), dtype=jnp.float32)
    clf_weight = jax.random.normal(k_w, (R, H), dtype=jnp.float32) * 0.02
    clf_bias = jax.random.normal(k_b, (R,), dtype=jnp.float32) * 0.02
    mask_positions = jax.random.randint(k_pos, (B,), 0, S, dtype=jnp.int32)

    # Plain-JAX reference.
    z_ref = hidden_states[jnp.arange(B), mask_positions, :]        # [B, H]
    logits_ref = z_ref @ clf_weight.T + clf_bias                   # [B, R]

    # Full forward (latent + logits).
    out = relation_extractor_forward(hidden_states, mask_positions,
                                     clf_weight, clf_bias)
    jax.block_until_ready(out)

    assert jnp.allclose(out["latent_representations"], z_ref, atol=1e-5), \
        "latent representation mismatch"
    # Dot operands are bf16 (f32 accumulation) -> loosened tolerance.
    assert jnp.allclose(out["relation_logits"], logits_ref,
                        atol=2e-2, rtol=2e-2), "relation logits mismatch"

    # Logits-only path (no z writeback).
    out2 = relation_extractor_forward(hidden_states, mask_positions,
                                      clf_weight, clf_bias,
                                      return_latent=False)
    jax.block_until_ready(out2)
    assert out2["latent_representations"] is None
    assert jnp.allclose(out2["relation_logits"], logits_ref,
                        atol=2e-2, rtol=2e-2), "logits-only path mismatch"

    print("KERNEL_OK")
</pallas_src>

<mosaic_0001>
module attributes {stable_mosaic.version = 11 : i64} {
  func.func @kernel(%arg0: i32, %arg1: memref<8xi32, #tpu.memory_space<smem>>, %arg2: memref<32x32xf32, #tpu.memory_space<any>>, %arg3: memref<32x128xbf16, #tpu.memory_space<vmem>>, %arg4: memref<1x128xf32, #tpu.memory_space<vmem>>, %arg5: memref<8x32xf32, #tpu.memory_space<vmem>>, %arg6: memref<8x128xf32, #tpu.memory_space<vmem>>, %arg7: memref<!tpu.dma_semaphore, #tpu.memory_space<semaphore_mem>>) attributes {dimension_semantics = [#tpu.dimension_semantics<parallel>], iteration_bounds = array<i64: 1>, scalar_prefetch = 1 : i64, scratch_operands = 1 : i64, tpu.core_type = #tpu.core_type<tc>, window_params = [{}, {pipeline_mode = #tpu.pipeline_mode<synchronous>, transform_indices = @transform_1, window_bounds = array<i64: 32, 128>}, {pipeline_mode = #tpu.pipeline_mode<synchronous>, transform_indices = @transform_2, window_bounds = array<i64: 1, 128>}, {transform_indices = @transform_3, window_bounds = array<i64: 8, 32>}, {transform_indices = @transform_4, window_bounds = array<i64: 8, 128>}]} {
    %c8_i32 = arith.constant 8 : i32
    %0 = arith.muli %arg0, %c8_i32 : i32
    %c0_i32 = arith.constant 0 : i32
    %1 = arith.addi %0, %c0_i32 : i32
    %2 = arith.index_cast %1 : i32 to index
    %3 = memref.load %arg1[%2] : memref<8xi32, #tpu.memory_space<smem>>
    %c0_i32_0 = arith.constant 0 : i32
    %4 = tpu.memref_slice %arg2[%3, %c0_i32_0] : memref<32x32xf32, #tpu.memory_space<any>> -> memref<1x32xf32, #tpu.memory_space<any>>
    %c0_i32_1 = arith.constant 0 : i32
    %c0_i32_2 = arith.constant 0 : i32
    %5 = tpu.memref_slice %arg5[%c0_i32_1, %c0_i32_2] : memref<8x32xf32, #tpu.memory_space<vmem>> -> memref<1x32xf32, #tpu.memory_space<vmem>>
    tpu.enqueue_dma source(%4 : memref<1x32xf32, #tpu.memory_space<any>>) target(%5 : memref<1x32xf32, #tpu.memory_space<vmem>>) target_semaphore(%arg7 : memref<!tpu.dma_semaphore, #tpu.memory_space<semaphore_mem>>)
    %c8_i32_3 = arith.constant 8 : i32
    %6 = arith.muli %arg0, %c8_i32_3 : i32
    %c1_i32 = arith.constant 1 : i32
    %7 = arith.addi %6, %c1_i32 : i32
    %8 = arith.index_cast %7 : i32 to index
    %9 = memref.load %arg1[%8] : memref<8xi32, #tpu.memory_space<smem>>
    %c0_i32_4 = arith.constant 0 : i32
    %10 = tpu.memref_slice %arg2[%9, %c0_i32_4] : memref<32x32xf32, #tpu.memory_space<any>> -> memref<1x32xf32, #tpu.memory_space<any>>
    %c1_i32_5 = arith.constant 1 : i32
    %c0_i32_6 = arith.constant 0 : i32
    %11 = tpu.memref_slice %arg5[%c1_i32_5, %c0_i32_6] : memref<8x32xf32, #tpu.memory_space<vmem>> -> memref<1x32xf32, #tpu.memory_space<vmem>>
    tpu.enqueue_dma source(%10 : memref<1x32xf32, #tpu.memory_space<any>>) target(%11 : memref<1x32xf32, #tpu.memory_space<vmem>>) target_semaphore(%arg7 : memref<!tpu.dma_semaphore, #tpu.memory_space<semaphore_mem>>)
    %c8_i32_7 = arith.constant 8 : i32
    %12 = arith.muli %arg0, %c8_i32_7 : i32
    %c2_i32 = arith.constant 2 : i32
    %13 = arith.addi %12, %c2_i32 : i32
    %14 = arith.index_cast %13 : i32 to index
    %15 = memref.load %arg1[%14] : memref<8xi32, #tpu.memory_space<smem>>
    %c0_i32_8 = arith.constant 0 : i32
    %16 = tpu.memref_slice %arg2[%15, %c0_i32_8] : memref<32x32xf32, #tpu.memory_space<any>> -> memref<1x32xf32, #tpu.memory_space<any>>
    %c2_i32_9 = arith.constant 2 : i32
    %c0_i32_10 = arith.constant 0 : i32
    %17 = tpu.memref_slice %arg5[%c2_i32_9, %c0_i32_10] : memref<8x32xf32, #tpu.memory_space<vmem>> -> memref<1x32xf32, #tpu.memory_space<vmem>>
    tpu.enqueue_dma source(%16 : memref<1x32xf32, #tpu.memory_space<any>>) target(%17 : memref<1x32xf32, #tpu.memory_space<vmem>>) target_semaphore(%arg7 : memref<!tpu.dma_semaphore, #tpu.memory_space<semaphore_mem>>)
    %c8_i32_11 = arith.constant 8 : i32
    %18 = arith.muli %arg0, %c8_i32_11 : i32
    %c3_i32 = arith.constant 3 : i32
    %19 = arith.addi %18, %c3_i32 : i32
    %20 = arith.index_cast %19 : i32 to index
    %21 = memref.load %arg1[%20] : memref<8xi32, #tpu.memory_space<smem>>
    %c0_i32_12 = arith.constant 0 : i32
    %22 = tpu.memref_slice %arg2[%21, %c0_i32_12] : memref<32x32xf32, #tpu.memory_space<any>> -> memref<1x32xf32, #tpu.memory_space<any>>
    %c3_i32_13 = arith.constant 3 : i32
    %c0_i32_14 = arith.constant 0 : i32
    %23 = tpu.memref_slice %arg5[%c3_i32_13, %c0_i32_14] : memref<8x32xf32, #tpu.memory_space<vmem>> -> memref<1x32xf32, #tpu.memory_space<vmem>>
    tpu.enqueue_dma source(%22 : memref<1x32xf32, #tpu.memory_space<any>>) target(%23 : memref<1x32xf32, #tpu.memory_space<vmem>>) target_semaphore(%arg7 : memref<!tpu.dma_semaphore, #tpu.memory_space<semaphore_mem>>)
    %c8_i32_15 = arith.constant 8 : i32
    %24 = arith.muli %arg0, %c8_i32_15 : i32
    %c4_i32 = arith.constant 4 : i32
    %25 = arith.addi %24, %c4_i32 : i32
    %26 = arith.index_cast %25 : i32 to index
    %27 = memref.load %arg1[%26] : memref<8xi32, #tpu.memory_space<smem>>
    %c0_i32_16 = arith.constant 0 : i32
    %28 = tpu.memref_slice %arg2[%27, %c0_i32_16] : memref<32x32xf32, #tpu.memory_space<any>> -> memref<1x32xf32, #tpu.memory_space<any>>
    %c4_i32_17 = arith.constant 4 : i32
    %c0_i32_18 = arith.constant 0 : i32
    %29 = tpu.memref_slice %arg5[%c4_i32_17, %c0_i32_18] : memref<8x32xf32, #tpu.memory_space<vmem>> -> memref<1x32xf32, #tpu.memory_space<vmem>>
    tpu.enqueue_dma source(%28 : memref<1x32xf32, #tpu.memory_space<any>>) target(%29 : memref<1x32xf32, #tpu.memory_space<vmem>>) target_semaphore(%arg7 : memref<!tpu.dma_semaphore, #tpu.memory_space<semaphore_mem>>)
    %c8_i32_19 = arith.constant 8 : i32
    %30 = arith.muli %arg0, %c8_i32_19 : i32
    %c5_i32 = arith.constant 5 : i32
    %31 = arith.addi %30, %c5_i32 : i32
    %32 = arith.index_cast %31 : i32 to index
    %33 = memref.load %arg1[%32] : memref<8xi32, #tpu.memory_space<smem>>
    %c0_i32_20 = arith.constant 0 : i32
    %34 = tpu.memref_slice %arg2[%33, %c0_i32_20] : memref<32x32xf32, #tpu.memory_space<any>> -> memref<1x32xf32, #tpu.memory_space<any>>
    %c5_i32_21 = arith.constant 5 : i32
    %c0_i32_22 = arith.constant 0 : i32
    %35 = tpu.memref_slice %arg5[%c5_i32_21, %c0_i32_22] : memref<8x32xf32, #tpu.memory_space<vmem>> -> memref<1x32xf32, #tpu.memory_space<vmem>>
    tpu.enqueue_dma source(%34 : memref<1x32xf32, #tpu.memory_space<any>>) target(%35 : memref<1x32xf32, #tpu.memory_space<vmem>>) target_semaphore(%arg7 : memref<!tpu.dma_semaphore, #tpu.memory_space<semaphore_mem>>)
    %c8_i32_23 = arith.constant 8 : i32
    %36 = arith.muli %arg0, %c8_i32_23 : i32
    %c6_i32 = arith.constant 6 : i32
    %37 = arith.addi %36, %c6_i32 : i32
    %38 = arith.index_cast %37 : i32 to index
    %39 = memref.load %arg1[%38] : memref<8xi32, #tpu.memory_space<smem>>
    %c0_i32_24 = arith.constant 0 : i32
    %40 = tpu.memref_slice %arg2[%39, %c0_i32_24] : memref<32x32xf32, #tpu.memory_space<any>> -> memref<1x32xf32, #tpu.memory_space<any>>
    %c6_i32_25 = arith.constant 6 : i32
    %c0_i32_26 = arith.constant 0 : i32
    %41 = tpu.memref_slice %arg5[%c6_i32_25, %c0_i32_26] : memref<8x32xf32, #tpu.memory_space<vmem>> -> memref<1x32xf32, #tpu.memory_space<vmem>>
    tpu.enqueue_dma source(%40 : memref<1x32xf32, #tpu.memory_space<any>>) target(%41 : memref<1x32xf32, #tpu.memory_space<vmem>>) target_semaphore(%arg7 : memref<!tpu.dma_semaphore, #tpu.memory_space<semaphore_mem>>)
    %c8_i32_27 = arith.constant 8 : i32
    %42 = arith.muli %arg0, %c8_i32_27 : i32
    %c7_i32 = arith.constant 7 : i32
    %43 = arith.addi %42, %c7_i32 : i32
    %44 = arith.index_cast %43 : i32 to index
    %45 = memref.load %arg1[%44] : memref<8xi32, #tpu.memory_space<smem>>
    %c0_i32_28 = arith.constant 0 : i32
    %46 = tpu.memref_slice %arg2[%45, %c0_i32_28] : memref<32x32xf32, #tpu.memory_space<any>> -> memref<1x32xf32, #tpu.memory_space<any>>
    %c7_i32_29 = arith.constant 7 : i32
    %c0_i32_30 = arith.constant 0 : i32
    %47 = tpu.memref_slice %arg5[%c7_i32_29, %c0_i32_30] : memref<8x32xf32, #tpu.memory_space<vmem>> -> memref<1x32xf32, #tpu.memory_space<vmem>>
    tpu.enqueue_dma source(%46 : memref<1x32xf32, #tpu.memory_space<any>>) target(%47 : memref<1x32xf32, #tpu.memory_space<vmem>>) target_semaphore(%arg7 : memref<!tpu.dma_semaphore, #tpu.memory_space<semaphore_mem>>)
    %c0_i32_31 = arith.constant 0 : i32
    %48 = tpu.memref_slice %arg2[%3, %c0_i32_31] : memref<32x32xf32, #tpu.memory_space<any>> -> memref<1x32xf32, #tpu.memory_space<any>>
    %c0_i32_32 = arith.constant 0 : i32
    %c0_i32_33 = arith.constant 0 : i32
    %49 = tpu.memref_slice %arg5[%c0_i32_32, %c0_i32_33] : memref<8x32xf32, #tpu.memory_space<vmem>> -> memref<1x32xf32, #tpu.memory_space<vmem>>
    tpu.wait_dma2 semaphore(%arg7 : memref<!tpu.dma_semaphore, #tpu.memory_space<semaphore_mem>>) src(%48 : memref<1x32xf32, #tpu.memory_space<any>>) dst(%49 : memref<1x32xf32, #tpu.memory_space<vmem>>)
    %c0_i32_34 = arith.constant 0 : i32
    %50 = tpu.memref_slice %arg2[%9, %c0_i32_34] : memref<32x32xf32, #tpu.memory_space<any>> -> memref<1x32xf32, #tpu.memory_space<any>>
    %c1_i32_35 = arith.constant 1 : i32
    %c0_i32_36 = arith.constant 0 : i32
    %51 = tpu.memref_slice %arg5[%c1_i32_35, %c0_i32_36] : memref<8x32xf32, #tpu.memory_space<vmem>> -> memref<1x32xf32, #tpu.memory_space<vmem>>
    tpu.wait_dma2 semaphore(%arg7 : memref<!tpu.dma_semaphore, #tpu.memory_space<semaphore_mem>>) src(%50 : memref<1x32xf32, #tpu.memory_space<any>>) dst(%51 : memref<1x32xf32, #tpu.memory_space<vmem>>)
    %c0_i32_37 = arith.constant 0 : i32
    %52 = tpu.memref_slice %arg2[%15, %c0_i32_37] : memref<32x32xf32, #tpu.memory_space<any>> -> memref<1x32xf32, #tpu.memory_space<any>>
    %c2_i32_38 = arith.constant 2 : i32
    %c0_i32_39 = arith.constant 0 : i32
    %53 = tpu.memref_slice %arg5[%c2_i32_38, %c0_i32_39] : memref<8x32xf32, #tpu.memory_space<vmem>> -> memref<1x32xf32, #tpu.memory_space<vmem>>
    tpu.wait_dma2 semaphore(%arg7 : memref<!tpu.dma_semaphore, #tpu.memory_space<semaphore_mem>>) src(%52 : memref<1x32xf32, #tpu.memory_space<any>>) dst(%53 : memref<1x32xf32, #tpu.memory_space<vmem>>)
    %c0_i32_40 = arith.constant 0 : i32
    %54 = tpu.memref_slice %arg2[%21, %c0_i32_40] : memref<32x32xf32, #tpu.memory_space<any>> -> memref<1x32xf32, #tpu.memory_space<any>>
    %c3_i32_41 = arith.constant 3 : i32
    %c0_i32_42 = arith.constant 0 : i32
    %55 = tpu.memref_slice %arg5[%c3_i32_41, %c0_i32_42] : memref<8x32xf32, #tpu.memory_space<vmem>> -> memref<1x32xf32, #tpu.memory_space<vmem>>
    tpu.wait_dma2 semaphore(%arg7 : memref<!tpu.dma_semaphore, #tpu.memory_space<semaphore_mem>>) src(%54 : memref<1x32xf32, #tpu.memory_space<any>>) dst(%55 : memref<1x32xf32, #tpu.memory_space<vmem>>)
    %c0_i32_43 = arith.constant 0 : i32
    %56 = tpu.memref_slice %arg2[%27, %c0_i32_43] : memref<32x32xf32, #tpu.memory_space<any>> -> memref<1x32xf32, #tpu.memory_space<any>>
    %c4_i32_44 = arith.constant 4 : i32
    %c0_i32_45 = arith.constant 0 : i32
    %57 = tpu.memref_slice %arg5[%c4_i32_44, %c0_i32_45] : memref<8x32xf32, #tpu.memory_space<vmem>> -> memref<1x32xf32, #tpu.memory_space<vmem>>
    tpu.wait_dma2 semaphore(%arg7 : memref<!tpu.dma_semaphore, #tpu.memory_space<semaphore_mem>>) src(%56 : memref<1x32xf32, #tpu.memory_space<any>>) dst(%57 : memref<1x32xf32, #tpu.memory_space<vmem>>)
    %c0_i32_46 = arith.constant 0 : i32
    %58 = tpu.memref_slice %arg2[%33, %c0_i32_46] : memref<32x32xf32, #tpu.memory_space<any>> -> memref<1x32xf32, #tpu.memory_space<any>>
    %c5_i32_47 = arith.constant 5 : i32
    %c0_i32_48 = arith.constant 0 : i32
    %59 = tpu.memref_slice %arg5[%c5_i32_47, %c0_i32_48] : memref<8x32xf32, #tpu.memory_space<vmem>> -> memref<1x32xf32, #tpu.memory_space<vmem>>
    tpu.wait_dma2 semaphore(%arg7 : memref<!tpu.dma_semaphore, #tpu.memory_space<semaphore_mem>>) src(%58 : memref<1x32xf32, #tpu.memory_space<any>>) dst(%59 : memref<1x32xf32, #tpu.memory_space<vmem>>)
    %c0_i32_49 = arith.constant 0 : i32
    %60 = tpu.memref_slice %arg2[%39, %c0_i32_49] : memref<32x32xf32, #tpu.memory_space<any>> -> memref<1x32xf32, #tpu.memory_space<any>>
    %c6_i32_50 = arith.constant 6 : i32
    %c0_i32_51 = arith.constant 0 : i32
    %61 = tpu.memref_slice %arg5[%c6_i32_50, %c0_i32_51] : memref<8x32xf32, #tpu.memory_space<vmem>> -> memref<1x32xf32, #tpu.memory_space<vmem>>
    tpu.wait_dma2 semaphore(%arg7 : memref<!tpu.dma_semaphore, #tpu.memory_space<semaphore_mem>>) src(%60 : memref<1x32xf32, #tpu.memory_space<any>>) dst(%61 : memref<1x32xf32, #tpu.memory_space<vmem>>)
    %c0_i32_52 = arith.constant 0 : i32
    %62 = tpu.memref_slice %arg2[%45, %c0_i32_52] : memref<32x32xf32, #tpu.memory_space<any>> -> memref<1x32xf32, #tpu.memory_space<any>>
    %c7_i32_53 = arith.constant 7 : i32
    %c0_i32_54 = arith.constant 0 : i32
    %63 = tpu.memref_slice %arg5[%c7_i32_53, %c0_i32_54] : memref<8x32xf32, #tpu.memory_space<vmem>> -> memref<1x32xf32, #tpu.memory_space<vmem>>
    tpu.wait_dma2 semaphore(%arg7 : memref<!tpu.dma_semaphore, #tpu.memory_space<semaphore_mem>>) src(%62 : memref<1x32xf32, #tpu.memory_space<any>>) dst(%63 : memref<1x32xf32, #tpu.memory_space<vmem>>)
    %c0 = arith.constant 0 : index
    %c0_55 = arith.constant 0 : index
    %64 = vector.load %arg5[%c0, %c0_55] : memref<8x32xf32, #tpu.memory_space<vmem>>, vector<8x32xf32>
    %65 = arith.truncf %64 : vector<8x32xf32> to vector<8x32xbf16>
    %c0_56 = arith.constant 0 : index
    %c0_57 = arith.constant 0 : index
    %66 = vector.load %arg3[%c0_56, %c0_57] : memref<32x128xbf16, #tpu.memory_space<vmem>>, vector<32x128xbf16>
    %cst = arith.constant dense<0.000000e+00> : vector<8x128xf32>
    %67 = tpu.matmul %65, %66, %cst {dimension_numbers = #tpu.dot_dimension_numbers<[1], [0], [0], [1], [0, 0, 1, 1], [], []>} : vector<8x32xbf16>, vector<32x128xbf16>, vector<8x128xf32> -> vector<8x128xf32>
    %c0_58 = arith.constant 0 : index
    %c0_59 = arith.constant 0 : index
    %68 = vector.load %arg4[%c0_58, %c0_59] : memref<1x128xf32, #tpu.memory_space<vmem>>, vector<1x128xf32>
    %69 = vector.broadcast %68 : vector<1x128xf32> to vector<8x128xf32>
    %70 = arith.addf %67, %69 : vector<8x128xf32>
    %c0_60 = arith.constant 0 : index
    %c0_61 = arith.constant 0 : index
    %71 = vector.load %arg6[%c0_60, %c0_61] : memref<8x128xf32, #tpu.memory_space<vmem>>, vector<8x128xf32>
    tpu.vector_store %arg6[%c0_60, %c0_61], %70 {strides = array<i32>} : memref<8x128xf32, #tpu.memory_space<vmem>>, vector<8x128xf32>,
    return
  }
  func.func @transform_1(%arg0: i32, %arg1: memref<8xi32, #tpu.memory_space<smem>>) -> (i32, i32) {
    %c0_i32 = arith.constant 0 : i32
    %c0_i32_0 = arith.constant 0 : i32
    %c0_i32_1 = arith.constant 0 : i32
    return %c0_i32, %c0_i32_0 : i32, i32
  }
  func.func @transform_2(%arg0: i32, %arg1: memref<8xi32, #tpu.memory_space<smem>>) -> (i32, i32) {
    %c0_i32 = arith.constant 0 : i32
    %c0_i32_0 = arith.constant 0 : i32
    %c0_i32_1 = arith.constant 0 : i32
    return %c0_i32, %c0_i32_0 : i32, i32
  }
  func.func @transform_3(%arg0: i32, %arg1: memref<8xi32, #tpu.memory_space<smem>>) -> (i32, i32) {
    %c0_i32 = arith.constant 0 : i32
    %c0_i32_0 = arith.constant 0 : i32
    return %arg0, %c0_i32 : i32, i32
  }
  func.func @transform_4(%arg0: i32, %arg1: memref<8xi32, #tpu.memory_space<smem>>) -> (i32, i32) {
    %c0_i32 = arith.constant 0 : i32
    %c0_i32_0 = arith.constant 0 : i32
    return %arg0, %c0_i32 : i32, i32
  }
}

</mosaic_0001>

<llo_original>
// kernel: tpu_custom_call.1
$region0: #{tpu_custom_call.1}
  #allocation0 [shape = 'u32[]', space=smem, size = 0x4, offset = 0x4, fixed_abs, tag = 'smem constant byte address 0x4 - core index']
  #allocation1 [shape = 'u32[144,128]{1,0:T(1,128)}', space=vmem, size = 0x12000, scoped, tag = 'internal scratch']
  #allocation2 [shape = 's32[1]{0}', space=sflag, size = 0x4, scoped, tag = 'scratch operand']
  #allocation3 [shape = 's32[1]{0}', space=sflag, size = 0x4, scoped, tag = 'scoped memory for tpu_custom_call.1']
  #allocation4 [shape = 'u8[512]{0}', space=smem, size = 0x200, scoped, tag = 'prefetched SMEM operand 0']
  #allocation11 [shape = 's32[]', space=sflag, size = 0x4, offset = 0, fixed_abs, tag = 'sflag constant byte address 0x0 - dummy sync flag']
  #allocation12 [shape = 's32[]', space=sflag, size = 0x4, offset = 0, fixed_abs, tag = 'sflag constant byte address 0x0 - dummy sync flag']
  #allocation13 [shape = 'u32[]', space=smem, size = 0x4, offset = 0x44, fixed_abs, tag = 'smem constant byte address 0x44 - assertion arg 0']
  #allocation14 [shape = 'u32[]', space=smem, size = 0x4, offset = 0x48, fixed_abs, tag = 'smem constant byte address 0x48 - assertion arg 1']
  #allocation15 [shape = 's32[]', space=sflag, size = 0x4, offset = 0, fixed_abs, tag = 'sflag constant byte address 0x0 - dummy sync flag']
  #allocation16 [shape = 's32[]', space=sflag, size = 0x4, offset = 0, fixed_abs, tag = 'sflag constant byte address 0x0 - dummy sync flag']
  #allocation17 [shape = 's32[]', space=sflag, size = 0x4, offset = 0, fixed_abs, tag = 'sflag constant byte address 0x0 - dummy sync flag']
  #allocation18 [shape = 's32[]', space=sflag, size = 0x4, offset = 0, fixed_abs, tag = 'sflag constant byte address 0x0 - dummy sync flag']
  #allocation19 [shape = 's32[]', space=sflag, size = 0x4, offset = 0, fixed_abs, tag = 'sflag constant byte address 0x0 - dummy sync flag']
  #allocation20 [shape = 's32[]', space=sflag, size = 0x4, offset = 0, fixed_abs, tag = 'sflag constant byte address 0x0 - dummy sync flag']
  #allocation21 [shape = 's32[]', space=sflag, size = 0x4, offset = 0, fixed_abs, tag = 'sflag constant byte address 0x0 - dummy sync flag']
  #allocation22 [shape = 's32[]', space=sflag, size = 0x4, offset = 0, fixed_abs, tag = 'sflag constant byte address 0x0 - dummy sync flag']
  #allocation23 [shape = 's32[]', space=sflag, size = 0x4, offset = 0, fixed_abs, tag = 'sflag constant byte address 0x0 - dummy sync flag']
  #allocation24 [shape = 's32[]', space=sflag, size = 0x4, offset = 0, fixed_abs, tag = 'sflag constant byte address 0x0 - dummy sync flag']
  #allocation25 [shape = 's32[]', space=sflag, size = 0x4, offset = 0, fixed_abs, tag = 'sflag constant byte address 0x0 - dummy sync flag']
  #allocation26 [shape = 's32[]', space=sflag, size = 0x4, offset = 0, fixed_abs, tag = 'sflag constant byte address 0x0 - dummy sync flag']
  #allocation27 [shape = 's32[]', space=sflag, size = 0x4, offset = 0, fixed_abs, tag = 'sflag constant byte address 0x0 - dummy sync flag']
  #allocation28 [shape = 's32[]', space=sflag, size = 0x4, offset = 0, fixed_abs, tag = 'sflag constant byte address 0x0 - dummy sync flag']
  %s0 = inlined_call_operand.hbm [shape: s32[8], index: 0, kind: input, shape index: {}]
  %s1 = inlined_call_operand.hbm [shape: f32[32,32], index: 1, kind: input, shape index: {}]
  %s2 = inlined_call_operand.hbm [shape: bf16[32,128], index: 2, kind: input, shape index: {}]
  %s3 = inlined_call_operand.vmem [shape: f32[1,128], index: 3, kind: input, shape index: {}]
  %s4 = inlined_call_operand.hbm [shape: f32[8,32], index: 4, kind: output, shape index: {0}]
  %s5 = inlined_call_operand.hbm [shape: f32[8,128], index: 5, kind: output, shape index: {1}]
  %6 = xla_tuple %s4, %s5
  %s7 = sld [smem:[#allocation0]]
  $region62: #{tpu_custom_call.1} parent=0
    _
  %s9 = ssub.s32 1, %s7
  %s10 = scalar_select 0, %s9, %s7
  %12 = dma.hbm_to_smem %s0, 16, [#allocation4], [#allocation3]
  %13 = dma.done [#allocation3], 16
  %14 = sfence
  $region1: #{tpu_custom_call.1} parent=0
    #allocation5 [shape = 'u8[8192]{0}', space=vmem, size = 0x2000, scoped, tag = 'input window, operand 2, single buffered']
    #allocation6 [shape = 's32[1]{0}', space=sflag, size = 0x4, scoped, tag = 'scoped memory for tpu_custom_call.1']
    #allocation7 [shape = 's32[1]{0}', space=sflag, size = 0x4, scoped, tag = 'scoped memory for tpu_custom_call.1']
    #allocation8 [shape = 'u8[4096]{0}', space=vmem, size = 0x1000, scoped, tag = 'output window, operand 0, single buffered']
    #allocation9 [shape = 'u8[4096]{0}', space=vmem, size = 0x1000, scoped, tag = 'output window, operand 1, single buffered']
    #allocation10 [shape = 's32[1]{0}', space=sflag, size = 0x4, scoped, tag = 'scoped memory for tpu_custom_call.1']
    %15 = vsyncpa [#allocation6], 0
    %16 = vsyncpa [#allocation7], 0
    %17 = vsyncpa [#allocation10], 0
    // Predicated region
    $region2: #{tpu_custom_call.1} parent=1 // pred_check
      _
    $region3: #{tpu_custom_call.1} parent=1 // pred_check_branch
      %19 = sbr.rel (0) target = $region5
    $region4: #{tpu_custom_call.1} parent=1 // pred_region
      %s21 = ssub.s32 256, 256
      %22 = vsyncadd [#allocation6], %s21
      %s23 = sshll.u32 [#allocation5], 4
      %s24 = int_to_ptr.vmem [resolvable:$true] %s23
      %29 = dma.hbm_to_vmem [thread:$0]  %s2, 256, %s24, [#allocation6], 64, 64, 4
    $region5: #{tpu_custom_call.1} parent=1 // pred_fallthru
      _
    // Predicated region
    $region6: #{tpu_custom_call.1} parent=1 // pred_check
      _
    $region7: #{tpu_custom_call.1} parent=1 // pred_check_branch
      %31 = sbr.rel (0) target = $region9
    $region8: #{tpu_custom_call.1} parent=1 // pred_region
      _
    $region9: #{tpu_custom_call.1} parent=1 // pred_fallthru
      _
    // Predicated region
    $region10: #{tpu_custom_call.1} parent=1 // pred_check
      _
    $region11: #{tpu_custom_call.1} parent=1 // pred_check_branch
      %33 = sbr.rel (0) target = $region13
    $region12: #{tpu_custom_call.1} parent=1 // pred_region
      %34 = dma.done [#allocation6], 256
    $region13: #{tpu_custom_call.1} parent=1 // pred_fallthru
      _
    %s36 = smul.u32 0, 8
    %s37 = sld [smem:[#allocation4 + %s36]]
    %s38 = smul.addr %s37, 16
    %s39 = scalar_lea.hbm %s1, %s38
    // Predicated region
    $region14: #{tpu_custom_call.1} parent=1 // pred_check
      _
    $region15: #{tpu_custom_call.1} parent=1 // pred_check_branch
      %41 = sbr.rel target = $region17
    $region16: #{tpu_custom_call.1} parent=1 // pred_region
      %42 = sst [smem:[#allocation13]] [#allocation12]
      %43 = sst [smem:[#allocation14]] [#allocation11]
    $region17: #{tpu_custom_call.1} parent=1 // pred_fallthru
      _
    %45 = shalt.err (0)
    %s47 = sshll.u32 [#allocation8], 4
    %s48 = int_to_ptr.vmem [resolvable:$true] %s47
    %50 = dma.hbm_to_vmem [thread:$0]  %s39, 16, %s48, [#allocation2]
    %s51 = sadd.s32 %s36, 1
    %s52 = sld [smem:[#allocation4 + %s51]]
    %s53 = smul.addr %s52, 16
    %s54 = scalar_lea.hbm %s1, %s53
    %s55 = scalar_lea.vmem [#allocation8], 1
    // Predicated region
    $region18: #{tpu_custom_call.1} parent=1 // pred_check
      _
    $region19: #{tpu_custom_call.1} parent=1 // pred_check_branch
      %57 = sbr.rel target = $region21
    $region20: #{tpu_custom_call.1} parent=1 // pred_region
      %58 = sst [smem:[#allocation13]] [#allocation16]
      %59 = sst [smem:[#allocation14]] [#allocation15]
    $region21: #{tpu_custom_call.1} parent=1 // pred_fallthru
      _
    %61 = shalt.err (0)
    %s63 = sshll.u32 %s55, 4
    %s64 = int_to_ptr.vmem [resolvable:$true] %s63
    %66 = dma.hbm_to_vmem [thread:$0]  %s54, 16, %s64, [#allocation2]
    %s67 = sadd.s32 %s36, 2
    %s68 = sld [smem:[#allocation4 + %s67]]
    %s69 = smul.addr %s68, 16
    %s70 = scalar_lea.hbm %s1, %s69
    %s71 = scalar_lea.vmem [#allocation8], 2
    // Predicated region
    $region22: #{tpu_custom_call.1} parent=1 // pred_check
      _
    $region23: #{tpu_custom_call.1} parent=1 // pred_check_branch
      %73 = sbr.rel target = $region25
    $region24: #{tpu_custom_call.1} parent=1 // pred_region
      %74 = sst [smem:[#allocation13]] [#allocation18]
      %75 = sst [smem:[#allocation14]] [#allocation17]
    $region25: #{tpu_custom_call.1} parent=1 // pred_fallthru
      _
    %77 = shalt.err (0)
    %s79 = sshll.u32 %s71, 4
    %s80 = int_to_ptr.vmem [resolvable:$true] %s79
    %82 = dma.hbm_to_vmem [thread:$0]  %s70, 16, %s80, [#allocation2]
    %s83 = sadd.s32 %s36, 3
    %s84 = sld [smem:[#allocation4 + %s83]]
    %s85 = smul.addr %s84, 16
    %s86 = scalar_lea.hbm %s1, %s85
    %s87 = scalar_lea.vmem [#allocation8], 3
    // Predicated region
    $region26: #{tpu_custom_call.1} parent=1 // pred_check
      _
    $region27: #{tpu_custom_call.1} parent=1 // pred_check_branch
      %89 = sbr.rel target = $region29
    $region28: #{tpu_custom_call.1} parent=1 // pred_region
      %90 = sst [smem:[#allocation13]] [#allocation20]
      %91 = sst [smem:[#allocation14]] [#allocation19]
    $region29: #{tpu_custom_call.1} parent=1 // pred_fallthru
      _
    %93 = shalt.err (0)
    %s95 = sshll.u32 %s87, 4
    %s96 = int_to_ptr.vmem [resolvable:$true] %s95
    %98 = dma.hbm_to_vmem [thread:$0]  %s86, 16, %s96, [#allocation2]
    %s99 = sadd.s32 %s36, 4
    %s100 = sld [smem:[#allocation4 + %s99]]
    %s101 = smul.addr %s100, 16
    %s102 = scalar_lea.hbm %s1, %s101
    %s103 = scalar_lea.vmem [#allocation8], 4
    // Predicated region
    $region30: #{tpu_custom_call.1} parent=1 // pred_check
      _
    $region31: #{tpu_custom_call.1} parent=1 // pred_check_branch
      %105 = sbr.rel target = $region33
    $region32: #{tpu_custom_call.1} parent=1 // pred_region
      %106 = sst [smem:[#allocation13]] [#allocation22]
      %107 = sst [smem:[#allocation14]] [#allocation21]
    $region33: #{tpu_custom_call.1} parent=1 // pred_fallthru
      _
    %109 = shalt.err (0)
    %s111 = sshll.u32 %s103, 4
    %s112 = int_to_ptr.vmem [resolvable:$true] %s111
    %114 = dma.hbm_to_vmem [thread:$0]  %s102, 16, %s112, [#allocation2]
    %s115 = sadd.s32 %s36, 5
    %s116 = sld [smem:[#allocation4 + %s115]]
    %s117 = smul.addr %s116, 16
    %s118 = scalar_lea.hbm %s1, %s117
    %s119 = scalar_lea.vmem [#allocation8], 5
    // Predicated region
    $region34: #{tpu_custom_call.1} parent=1 // pred_check
      _
    $region35: #{tpu_custom_call.1} parent=1 // pred_check_branch
      %121 = sbr.rel target = $region37
    $region36: #{tpu_custom_call.1} parent=1 // pred_region
      %122 = sst [smem:[#allocation13]] [#allocation24]
      %123 = sst [smem:[#allocation14]] [#allocation23]
    $region37: #{tpu_custom_call.1} parent=1 // pred_fallthru
      _
    %125 = shalt.err (0)
    %s127 = sshll.u32 %s119, 4
    %s128 = int_to_ptr.vmem [resolvable:$true] %s127
    %130 = dma.hbm_to_vmem [thread:$0]  %s118, 16, %s128, [#allocation2]
    %s131 = sadd.s32 %s36, 6
    %s132 = sld [smem:[#allocation4 + %s131]]
    %s133 = smul.addr %s132, 16
    %s134 = scalar_lea.hbm %s1, %s133
    %s135 = scalar_lea.vmem [#allocation8], 6
    // Predicated region
    $region38: #{tpu_custom_call.1} parent=1 // pred_check
      _
    $region39: #{tpu_custom_call.1} parent=1 // pred_check_branch
      %137 = sbr.rel target = $region41
    $region40: #{tpu_custom_call.1} parent=1 // pred_region
      %138 = sst [smem:[#allocation13]] [#allocation26]
      %139 = sst [smem:[#allocation14]] [#allocation25]
    $region41: #{tpu_custom_call.1} parent=1 // pred_fallthru
      _
    %141 = shalt.err (0)
    %s143 = sshll.u32 %s135, 4
    %s144 = int_to_ptr.vmem [resolvable:$true] %s143
    %146 = dma.hbm_to_vmem [thread:$0]  %s134, 16, %s144, [#allocation2]
    %s147 = sadd.s32 %s36, 7
    %s148 = sld [smem:[#allocation4 + %s147]]
    %s149 = smul.addr %s148, 16
    %s150 = scalar_lea.hbm %s1, %s149
    %s151 = scalar_lea.vmem [#allocation8], 7
    // Predicated region
    $region42: #{tpu_custom_call.1} parent=1 // pred_check
      _
    $region43: #{tpu_custom_call.1} parent=1 // pred_check_branch
      %153 = sbr.rel target = $region45
    $region44: #{tpu_custom_call.1} parent=1 // pred_region
      %154 = sst [smem:[#allocation13]] [#allocation28]
      %155 = sst [smem:[#allocation14]] [#allocation27]
    $region45: #{tpu_custom_call.1} parent=1 // pred_fallthru
      _
    %157 = shalt.err (0)
    %s159 = sshll.u32 %s151, 4
    %s160 = int_to_ptr.vmem [resolvable:$true] %s159
    %162 = dma.hbm_to_vmem [thread:$0]  %s150, 16, %s160, [#allocation2]
    %s163 = smul.u32 1, 1
    %s164 = sshll.u32 %s163, 4
    %165 = dma.done [#allocation2], %s164
    %s166 = sshll.u32 %s163, 4
    %167 = dma.done [#allocation2], %s166
    %s168 = sshll.u32 %s163, 4
    %169 = dma.done [#allocation2], %s168
    %s170 = sshll.u32 %s163, 4
    %171 = dma.done [#allocation2], %s170
    %s172 = sshll.u32 %s163, 4
    %173 = dma.done [#allocation2], %s172
    %s174 = sshll.u32 %s163, 4
    %175 = dma.done [#allocation2], %s174
    %s176 = sshll.u32 %s163, 4
    %177 = dma.done [#allocation2], %s176
    %s178 = sshll.u32 %s163, 4
    %179 = dma.done [#allocation2], %s178
    %v180 = vld [vmem:[#allocation8] sm:$0xff]
    %v181 = vpack.c.bf16 %v180, %v180
    %v182 = vld [vmem:[#allocation5] sm:$0xf]
    %v183 = vld [vmem:[#allocation5 + $0x4] sm:$0xf]
    %v184 = vld [vmem:[#allocation5 + $0x8] sm:$0xf]
    %v185 = vld [vmem:[#allocation5 + $0xc] sm:$0xf]
    %v186 = vld [vmem:[%s3] sm:$0x1]
    %v188 = vlaneseq
    %v189 = vshrl.u32 %v188, 7
    %v190 = vsub.s32 0, %v189
    %v191 = vrot.slane %v186, %v190
    %v197 = vunpack.c.l.b16 %v182
    %v198 = vunpack.c.l.b16 %v183
    %v199 = vunpack.c.l.b16 %v184
    %v200 = vunpack.c.l.b16 %v185
    %v201 = vpack.c.b16 %v198, %v197
    %v202 = vpack.c.b16 %v200, %v199
    %vm205 = vcmask 261120
    %v207 = vsel %vm205, %v181, 0
    %209 = vmatprep.subr.bf16.mxu0 0
    %210 = vmatpush1.bf16.msra.mxu0 0
    %211 = vmatprep.subr.bf16.mxu0 0
    %212 = vmatpush1.bf16.msra.mxu0 0
    %213 = vmatprep.subr.bf16.mxu0 0
    %214 = vmatpush1.bf16.msra.mxu0 0
    %215 = vmatprep.subr.bf16.mxu0 0
    %216 = vmatpush1.bf16.msra.mxu0 0
    %217 = vmatprep.subr.bf16.mxu0 0
    %218 = vmatpush1.bf16.msra.mxu0 0
    %219 = vmatprep.subr.bf16.mxu0 0
    %220 = vmatpush1.bf16.msra.mxu0 0
    %221 = vmatprep.subr.bf16.mxu0 0
    %222 = vmatpush1.bf16.msra.mxu0 %v202
    %223 = vmatprep.subr.bf16.mxu0 0
    %224 = vmatpush1.bf16.msra.mxu0 %v201
    %225 = vmatprep.subr.bf16.mxu0 0
    %226 = vmatpush2.bf16.msra.mxu0 0
    %227 = vmatprep.subr.bf16.mxu0 0
    %228 = vmatpush2.bf16.msra.mxu0 0
    %229 = vmatprep.subr.bf16.mxu0 0
    %230 = vmatpush2.bf16.msra.mxu0 0
    %231 = vmatprep.subr.bf16.mxu0 0
    %232 = vmatpush2.bf16.msra.mxu0 0
    %233 = vmatprep.subr.bf16.mxu0 0
    %234 = vmatpush2.bf16.msra.mxu0 0
    %235 = vmatprep.subr.bf16.mxu0 0
    %236 = vmatpush2.bf16.msra.mxu0 0
    %237 = vmatprep.subr.bf16.mxu0 0
    %238 = vmatpush2.bf16.msra.mxu0 0
    %239 = vmatprep.subr.bf16.mxu0 0
    %240 = vmatpush2.bf16.msra.mxu0 0
    %241 = vmatprep.mubr.bf16.mxu0 0
    %242 = vmatmul.mubr.bf16.gmra.mxu0 %v207
    %v243 = vpop.f32.mrf.mxu0
    %v244 = vadd.f32 %v191, %v243
    %v245 = vpop.f32.mrf.mxu0
    %v246 = vpop.f32.mrf.mxu0
    %v247 = vpop.f32.mrf.mxu0
    %248 = vdwg.mxu0
    %249 = vst [vmem:[#allocation9] sm:$0xff] %v244
    // Predicated region
    $region46: #{tpu_custom_call.1} parent=1 // pred_check
      _
    $region47: #{tpu_custom_call.1} parent=1 // pred_check_branch
      %251 = sbr.rel (0) target = $region49
    $region48: #{tpu_custom_call.1} parent=1 // pred_region
      %s253 = ssub.s32 128, 128
      %254 = vsyncadd [#allocation7], %s253
      %s256 = sshll.u32 [#allocation8], 4
      %s257 = int_to_ptr.vmem [resolvable:$true] %s256
      %259 = dma.vmem_to_hbm [thread:$0]  %s257, 128, %s4, [#allocation7]
    $region49: #{tpu_custom_call.1} parent=1 // pred_fallthru
      _
    // Predicated region
    $region50: #{tpu_custom_call.1} parent=1 // pred_check
      _
    $region51: #{tpu_custom_call.1} parent=1 // pred_check_branch
      %261 = sbr.rel (0) target = $region53
    $region52: #{tpu_custom_call.1} parent=1 // pred_region
      %s263 = ssub.s32 128, 128
      %264 = vsyncadd [#allocation10], %s263
      %s266 = sshll.u32 [#allocation9], 4
      %s267 = int_to_ptr.vmem [resolvable:$true] %s266
      %269 = dma.vmem_to_hbm [thread:$0]  %s267, 128, %s5, [#allocation10]
    $region53: #{tpu_custom_call.1} parent=1 // pred_fallthru
      _
    // Predicated region
    $region54: #{tpu_custom_call.1} parent=1 // pred_check
      _
    $region55: #{tpu_custom_call.1} parent=1 // pred_check_branch
      %271 = sbr.rel (0) target = $region57
    $region56: #{tpu_custom_call.1} parent=1 // pred_region
      %272 = dma.done [#allocation7], 128
    $region57: #{tpu_custom_call.1} parent=1 // pred_fallthru
      _
    // Predicated region
    $region58: #{tpu_custom_call.1} parent=1 // pred_check
      _
    $region59: #{tpu_custom_call.1} parent=1 // pred_check_branch
      %274 = sbr.rel (0) target = $region61
    $region60: #{tpu_custom_call.1} parent=1 // pred_region
      %275 = dma.done [#allocation10], 128
    $region61: #{tpu_custom_call.1} parent=1 // pred_fallthru
      _
    %276 = vsyncpa [#allocation6], 1
    %277 = vsyncpa [#allocation7], 1
    %278 = vsyncpa [#allocation10], 1
  %279 = vsyncmov [#allocation2]
  %s280 = vpop.sfrf %279
  %p281 = scmp.eq.s32.totalorder %s280, 0
  %p282 = pneg %p281
  %284 = shalt.err (%p282)

</llo_original>
